<compile_context>
chip_gen: v5e
topology: v5e:2x2
jax: 0.10.0
libtpu: 0.0.40
codegen_flags: <defaults>
</compile_context>

<pallas_src>
import functools

import jax
import jax.numpy as jnp
from jax.experimental import pallas as pl
from jax.experimental.pallas import tpu as pltpu

_LANE = 128     # TPU lane width  (last-dim tiling unit)
_SUBLANE = 8    # TPU sublane width (second-to-last-dim tiling unit)


def _round_up(x, m):
    return ((x + m - 1) // m) * m


def _qnet_kernel(x_ref, w1_ref, b1_ref, w2_ref, b2_ref, w3_ref, b3_ref, out_ref):
    """Fused 3-layer MLP on one (batch_tile, features) slab.

    Matmuls run on the MXU in the weight storage dtype (bf16 by default) with
    explicit f32 accumulation; bias-add / ReLU stay in f32 on the VPU.  The
    output is stored in the (narrow) weight dtype to halve HBM writeback.
    """
    cd = w1_ref.dtype
    x = x_ref[...].astype(cd)            # x arrives in its native dtype (f32)
    h1 = jnp.dot(x, w1_ref[...], preferred_element_type=jnp.float32) + b1_ref[...]
    h1 = jnp.maximum(h1, 0.0).astype(cd)
    h2 = jnp.dot(h1, w2_ref[...], preferred_element_type=jnp.float32) + b2_ref[...]
    h2 = jnp.maximum(h2, 0.0).astype(cd)
    y = jnp.dot(h2, w3_ref[...], preferred_element_type=jnp.float32) + b3_ref[...]
    out_ref[...] = y.astype(out_ref.dtype)


def prepare_qnetwork_params(w1, b1, w2, b2, w3, b3, *, compute_dtype=jnp.bfloat16):
    """Pad + cast QNetwork parameters ONCE (hoist this out of the training loop).

    Weights are expected in (in_features, out_features) layout, i.e. the
    transpose of PyTorch's nn.Linear `.weight`.  Hidden / output feature dims
    are zero-padded to 128 lanes; the state dim S is deliberately left
    unpadded (input-side lane sparsity is far cheaper than a 16x x-DMA blowup).
    Zero padding is exact: padded W rows multiply zero activations, padded
    hidden columns stay 0 through bias(0)+ReLU, and padded output columns are
    sliced off in `qnetwork_forward`.

    bf16 operands are the right choice on v5e/v6e/v7x alike (the MXU is bf16
    native everywhere); accumulation and bias/ReLU remain f32.
    """
    S, F1 = w1.shape
    F1b, F2 = w2.shape
    F2b, A = w3.shape
    assert F1b == F1 and F2b == F2, "layer width mismatch"
    cd = jnp.dtype(compute_dtype)

    F1_p = _round_up(F1, _LANE)
    F2_p = _round_up(F2, _LANE)
    A_p = _round_up(A, _LANE)

    w1_p = jnp.zeros((S, F1_p), cd).at[:, :F1].set(w1.astype(cd))
    w2_p = jnp.zeros((F1_p, F2_p), cd).at[:F1, :F2].set(w2.astype(cd))
    w3_p = jnp.zeros((F2_p, A_p), cd).at[:F2, :A].set(w3.astype(cd))
    # Biases stay f32: bias-add/ReLU run in f32 inside the kernel.
    b1_p = jnp.zeros((1, F1_p), jnp.float32).at[:, :F1].set(
        jnp.reshape(b1, (1, -1)).astype(jnp.float32))
    b2_p = jnp.zeros((1, F2_p), jnp.float32).at[:, :F2].set(
        jnp.reshape(b2, (1, -1)).astype(jnp.float32))
    b3_p = jnp.zeros((1, A_p), jnp.float32).at[:, :A].set(
        jnp.reshape(b3, (1, -1)).astype(jnp.float32))
    return (w1_p, b1_p, w2_p, b2_p, w3_p, b3_p)


@functools.partial(jax.jit,
                   static_argnames=("action_size", "batch_tile", "out_dtype"))
def qnetwork_forward(x, w1_p, b1_p, w2_p, b2_p, w3_p, b3_p, *, action_size,
                     batch_tile=1024, out_dtype=jnp.float32):
    """Forward pass: relu(x@W1+b1) -> relu(...@W2+b2) -> ...@W3+b3.

    Takes pre-padded / pre-cast params from `prepare_qnetwork_params`.
    Returns (B, action_size) Q-values in `out_dtype` (f32 by default; the
    kernel's internal output store is bf16 when compute_dtype is bf16).
    """
    B, S = x.shape
    S_w, F1_p = w1_p.shape
    F2_p = w2_p.shape[1]
    A_p = w3_p.shape[1]
    if S_w != S:
        raise ValueError(f"state dim mismatch: x has {S}, W1 expects {S_w}")
    cd = w1_p.dtype  # compute / storage dtype of weights and output

    # ---- Batch tiling ------------------------------------------------------
    # Big tiles amortize the ~0.35us per-grid-step overhead; but keep >=2 grid
    # steps for mid/large batches so ("parallel",) can shard across v7x's 2 TCs.
    B8 = _round_up(B, _SUBLANE)
    bt = min(_round_up(batch_tile, 2 * _SUBLANE), B8)
    if bt == B8 and B8 >= 8 * _SUBLANE:
        bt = _round_up(pl.cdiv(B8, 2), 2 * _SUBLANE)   # split -> >=2 grid steps
    B_p = _round_up(B8, bt)
    grid = (B_p // bt,)

    if B_p != B:
        x = jnp.pad(x, ((0, B_p - B), (0, 0)))          # zero rows, sliced off below

    # ---- Advisory cost + VMEM budget ----------------------------------------
    x_itemsize = jnp.dtype(x.dtype).itemsize
    w_elems = S * F1_p + F1_p * F2_p + F2_p * A_p
    b_elems = F1_p + F2_p + A_p
    flops = 2 * B_p * w_elems
    bytes_accessed = (B_p * S * x_itemsize + w_elems * cd.itemsize
                      + b_elems * 4 + B_p * A_p * cd.itemsize)
    vmem_need = (2 * bt * S * x_itemsize            # x tile (double-buffered)
                 + 2 * bt * A_p * cd.itemsize       # out tile (double-buffered)
                 + 2 * w_elems * cd.itemsize        # weights
                 + 2 * b_elems * 4                  # biases
                 + 2 * bt * max(F1_p, F2_p) * 4)    # f32 intermediates headroom
    vmem_limit = int(min(64 * 1024 * 1024, max(32 * 1024 * 1024, 2 * vmem_need)))

    out_p = pl.pallas_call(
        _qnet_kernel,
        out_shape=jax.ShapeDtypeStruct((B_p, A_p), cd),
        grid_spec=pltpu.PrefetchScalarGridSpec(
            num_scalar_prefetch=0,
            grid=grid,
            in_specs=[
                pl.BlockSpec((bt, S), lambda i: (i, 0)),       # x tile (S = full dim)
                pl.BlockSpec((S, F1_p), lambda i: (0, 0)),     # W1 (VMEM-resident)
                pl.BlockSpec((1, F1_p), lambda i: (0, 0)),     # b1
                pl.BlockSpec((F1_p, F2_p), lambda i: (0, 0)),  # W2 (VMEM-resident)
                pl.BlockSpec((1, F2_p), lambda i: (0, 0)),     # b2
                pl.BlockSpec((F2_p, A_p), lambda i: (0, 0)),   # W3 (VMEM-resident)
                pl.BlockSpec((1, A_p), lambda i: (0, 0)),      # b3
            ],
            out_specs=pl.BlockSpec((bt, A_p), lambda i: (i, 0)),
        ),
        compiler_params=pltpu.CompilerParams(
            # Batch tiles are independent -> shard grid across v7x's 2 TCs.
            dimension_semantics=("parallel",),
            vmem_limit_bytes=vmem_limit,
            # For fc widths >= 2048, also consider pipeline_mode=pl.Buffered(1)
            # on the constant weight/bias BlockSpecs to halve weight VMEM.
        ),
        cost_estimate=pl.CostEstimate(
            flops=flops, transcendentals=0, bytes_accessed=bytes_accessed),
    )(x, w1_p, b1_p, w2_p, b2_p, w3_p, b3_p)

    # Slice off padded rows / lanes; cast the (tiny) result back to f32 for the
    # DQN TD-error if requested.
    return out_p[:B, :action_size].astype(out_dtype)


def init_linear_params(key, fan_in, fan_out):
    """Match PyTorch nn.Linear default init: U(-1/sqrt(fan_in), +1/sqrt(fan_in))."""
    kw, kb = jax.random.split(key)
    bound = 1.0 / jnp.sqrt(jnp.float32(fan_in))
    w = jax.random.uniform(kw, (fan_in, fan_out), jnp.float32, -bound, bound)
    b = jax.random.uniform(kb, (1, fan_out), jnp.float32, -bound, bound)
    return w, b


def _bf16_matched_reference(x, w1, b1, w2, b2, w3, b3):
    """Pure-JAX reference replicating the kernel numerics exactly
    (bf16 matmul operands, f32 accumulation, f32 bias/ReLU, bf16 output store)."""
    cd = jnp.bfloat16
    h = jnp.maximum(
        jnp.dot(x.astype(cd), w1.astype(cd), preferred_element_type=jnp.float32) + b1, 0.0)
    h = jnp.maximum(
        jnp.dot(h.astype(cd), w2.astype(cd), preferred_element_type=jnp.float32) + b2, 0.0)
    y = jnp.dot(h.astype(cd), w3.astype(cd), preferred_element_type=jnp.float32) + b3
    return y.astype(cd).astype(jnp.float32)


if __name__ == "__main__":
    # Small shapes consistent with the module: state_size=8, action_size=4,
    # fc1_units=64, fc2_units=64, batch=8.
    state_size, action_size = 8, 4
    fc1_units, fc2_units = 64, 64
    batch = 8

    key = jax.random.PRNGKey(0)
    kx, k1, k2, k3 = jax.random.split(key, 4)

    x = jax.random.normal(kx, (batch, state_size), jnp.float32)
    w1, b1 = init_linear_params(k1, state_size, fc1_units)
    w2, b2 = init_linear_params(k2, fc1_units, fc2_units)
    w3, b3 = init_linear_params(k3, fc2_units, action_size)

    # Pad + cast parameters ONCE (hoisted out of the "training loop").
    params = jax.block_until_ready(
        prepare_qnetwork_params(w1, b1, w2, b2, w3, b3))

    out = qnetwork_forward(x, *params, action_size=action_size)
    out = jax.block_until_ready(out)
    assert out.shape == (batch, action_size)
    assert out.dtype == jnp.float32

    ref = _bf16_matched_reference(x, w1, b1, w2, b2, w3, b3)
    assert jnp.allclose(out, ref, atol=2e-2, rtol=2e-2), \
        "mismatch vs bf16-matched reference"

    # Loose sanity check against the exact f32 PyTorch math (only bf16 operand
    # / output rounding should separate them -- fine for DQN Q-values).
    ref32 = jnp.maximum(x @ w1 + b1, 0.0)
    ref32 = jnp.maximum(ref32 @ w2 + b2, 0.0)
    ref32 = ref32 @ w3 + b3
    assert jnp.allclose(out, ref32, atol=1e-1, rtol=5e-2), "mismatch vs f32 reference"

    # Exercise the multi-step grid + batch-padding path (4 grid steps, padded rows).
    batch2 = 200
    x2 = jax.random.normal(jax.random.PRNGKey(1), (batch2, state_size), jnp.float32)
    out2 = jax.block_until_ready(
        qnetwork_forward(x2, *params, action_size=action_size, batch_tile=64))
    ref2 = _bf16_matched_reference(x2, w1, b1, w2, b2, w3, b3)
    assert out2.shape == (batch2, action_size)
    assert jnp.allclose(out2, ref2, atol=2e-2, rtol=2e-2), \
        "mismatch vs bf16-matched reference (multi-tile)"

    print("KERNEL_OK")
</pallas_src>

<mosaic_0001>
module attributes {stable_mosaic.version = 11 : i64} {
  func.func @_qnet_kernel(%arg0: i32, %arg1: memref<8x8xf32, #tpu.memory_space<vmem>>, %arg2: memref<8x128xbf16, #tpu.memory_space<vmem>>, %arg3: memref<1x128xf32, #tpu.memory_space<vmem>>, %arg4: memref<128x128xbf16, #tpu.memory_space<vmem>>, %arg5: memref<1x128xf32, #tpu.memory_space<vmem>>, %arg6: memref<128x128xbf16, #tpu.memory_space<vmem>>, %arg7: memref<1x128xf32, #tpu.memory_space<vmem>>, %arg8: memref<8x128xbf16, #tpu.memory_space<vmem>>) attributes {dimension_semantics = [#tpu.dimension_semantics<parallel>], iteration_bounds = array<i64: 1>, scalar_prefetch = 0 : i64, scratch_operands = 0 : i64, tpu.core_type = #tpu.core_type<tc>, window_params = [{transform_indices = @transform_0, window_bounds = array<i64: 8, 8>}, {pipeline_mode = #tpu.pipeline_mode<synchronous>, transform_indices = @transform_1, window_bounds = array<i64: 8, 128>}, {pipeline_mode = #tpu.pipeline_mode<synchronous>, transform_indices = @transform_2, window_bounds = array<i64: 1, 128>}, {pipeline_mode = #tpu.pipeline_mode<synchronous>, transform_indices = @transform_3, window_bounds = array<i64: 128, 128>}, {pipeline_mode = #tpu.pipeline_mode<synchronous>, transform_indices = @transform_4, window_bounds = array<i64: 1, 128>}, {pipeline_mode = #tpu.pipeline_mode<synchronous>, transform_indices = @transform_5, window_bounds = array<i64: 128, 128>}, {pipeline_mode = #tpu.pipeline_mode<synchronous>, transform_indices = @transform_6, window_bounds = array<i64: 1, 128>}, {transform_indices = @transform_7, window_bounds = array<i64: 8, 128>}]} {
    %c0 = arith.constant 0 : index
    %c0_0 = arith.constant 0 : index
    %0 = vector.load %arg1[%c0, %c0_0] : memref<8x8xf32, #tpu.memory_space<vmem>>, vector<8x8xf32>
    %1 = arith.truncf %0 : vector<8x8xf32> to vector<8x8xbf16>
    %c0_1 = arith.constant 0 : index
    %c0_2 = arith.constant 0 : index
    %2 = vector.load %arg2[%c0_1, %c0_2] : memref<8x128xbf16, #tpu.memory_space<vmem>>, vector<8x128xbf16>
    %cst = arith.constant dense<0.000000e+00> : vector<8x128xf32>
    %3 = tpu.matmul %1, %2, %cst {dimension_numbers = #tpu.dot_dimension_numbers<[1], [0], [0], [1], [0, 0, 1, 1], [], []>} : vector<8x8xbf16>, vector<8x128xbf16>, vector<8x128xf32> -> vector<8x128xf32>
    %c0_3 = arith.constant 0 : index
    %c0_4 = arith.constant 0 : index
    %4 = vector.load %arg3[%c0_3, %c0_4] : memref<1x128xf32, #tpu.memory_space<vmem>>, vector<1x128xf32>
    %5 = vector.broadcast %4 : vector<1x128xf32> to vector<8x128xf32>
    %6 = arith.addf %3, %5 : vector<8x128xf32>
    %cst_5 = arith.constant 0.000000e+00 : f32
    %7 = vector.broadcast %cst_5 : f32 to vector<8x128xf32>
    %8 = arith.maximumf %6, %7 : vector<8x128xf32>
    %9 = arith.truncf %8 : vector<8x128xf32> to vector<8x128xbf16>
    %c0_6 = arith.constant 0 : index
    %c0_7 = arith.constant 0 : index
    %10 = vector.load %arg4[%c0_6, %c0_7] : memref<128x128xbf16, #tpu.memory_space<vmem>>, vector<128x128xbf16>
    %cst_8 = arith.constant dense<0.000000e+00> : vector<8x128xf32>
    %11 = tpu.matmul %9, %10, %cst_8 {dimension_numbers = #tpu.dot_dimension_numbers<[1], [0], [0], [1], [0, 0, 1, 1], [], []>} : vector<8x128xbf16>, vector<128x128xbf16>, vector<8x128xf32> -> vector<8x128xf32>
    %c0_9 = arith.constant 0 : index
    %c0_10 = arith.constant 0 : index
    %12 = vector.load %arg5[%c0_9, %c0_10] : memref<1x128xf32, #tpu.memory_space<vmem>>, vector<1x128xf32>
    %13 = vector.broadcast %12 : vector<1x128xf32> to vector<8x128xf32>
    %14 = arith.addf %11, %13 : vector<8x128xf32>
    %cst_11 = arith.constant 0.000000e+00 : f32
    %15 = vector.broadcast %cst_11 : f32 to vector<8x128xf32>
    %16 = arith.maximumf %14, %15 : vector<8x128xf32>
    %17 = arith.truncf %16 : vector<8x128xf32> to vector<8x128xbf16>
    %c0_12 = arith.constant 0 : index
    %c0_13 = arith.constant 0 : index
    %18 = vector.load %arg6[%c0_12, %c0_13] : memref<128x128xbf16, #tpu.memory_space<vmem>>, vector<128x128xbf16>
    %cst_14 = arith.constant dense<0.000000e+00> : vector<8x128xf32>
    %19 = tpu.matmul %17, %18, %cst_14 {dimension_numbers = #tpu.dot_dimension_numbers<[1], [0], [0], [1], [0, 0, 1, 1], [], []>} : vector<8x128xbf16>, vector<128x128xbf16>, vector<8x128xf32> -> vector<8x128xf32>
    %c0_15 = arith.constant 0 : index
    %c0_16 = arith.constant 0 : index
    %20 = vector.load %arg7[%c0_15, %c0_16] : memref<1x128xf32, #tpu.memory_space<vmem>>, vector<1x128xf32>
    %21 = vector.broadcast %20 : vector<1x128xf32> to vector<8x128xf32>
    %22 = arith.addf %19, %21 : vector<8x128xf32>
    %23 = arith.truncf %22 : vector<8x128xf32> to vector<8x128xbf16>
    %c0_17 = arith.constant 0 : index
    %c0_18 = arith.constant 0 : index
    %24 = vector.load %arg8[%c0_17, %c0_18] : memref<8x128xbf16, #tpu.memory_space<vmem>>, vector<8x128xbf16>
    tpu.vector_store %arg8[%c0_17, %c0_18], %23 {strides = array<i32>} : memref<8x128xbf16, #tpu.memory_space<vmem>>, vector<8x128xbf16>,
    return
  }
  func.func @transform_0(%arg0: i32) -> (i32, i32) {
    %c0_i32 = arith.constant 0 : i32
    %c0_i32_0 = arith.constant 0 : i32
    return %arg0, %c0_i32 : i32, i32
  }
  func.func @transform_1(%arg0: i32) -> (i32, i32) {
    %c0_i32 = arith.constant 0 : i32
    %c0_i32_0 = arith.constant 0 : i32
    %c0_i32_1 = arith.constant 0 : i32
    return %c0_i32, %c0_i32_0 : i32, i32
  }
  func.func @transform_2(%arg0: i32) -> (i32, i32) {
    %c0_i32 = arith.constant 0 : i32
    %c0_i32_0 = arith.constant 0 : i32
    %c0_i32_1 = arith.constant 0 : i32
    return %c0_i32, %c0_i32_0 : i32, i32
  }
  func.func @transform_3(%arg0: i32) -> (i32, i32) {
    %c0_i32 = arith.constant 0 : i32
    %c0_i32_0 = arith.constant 0 : i32
    %c0_i32_1 = arith.constant 0 : i32
    return %c0_i32, %c0_i32_0 : i32, i32
  }
  func.func @transform_4(%arg0: i32) -> (i32, i32) {
    %c0_i32 = arith.constant 0 : i32
    %c0_i32_0 = arith.constant 0 : i32
    %c0_i32_1 = arith.constant 0 : i32
    return %c0_i32, %c0_i32_0 : i32, i32
  }
  func.func @transform_5(%arg0: i32) -> (i32, i32) {
    %c0_i32 = arith.constant 0 : i32
    %c0_i32_0 = arith.constant 0 : i32
    %c0_i32_1 = arith.constant 0 : i32
    return %c0_i32, %c0_i32_0 : i32, i32
  }
  func.func @transform_6(%arg0: i32) -> (i32, i32) {
    %c0_i32 = arith.constant 0 : i32
    %c0_i32_0 = arith.constant 0 : i32
    %c0_i32_1 = arith.constant 0 : i32
    return %c0_i32, %c0_i32_0 : i32, i32
  }
  func.func @transform_7(%arg0: i32) -> (i32, i32) {
    %c0_i32 = arith.constant 0 : i32
    %c0_i32_0 = arith.constant 0 : i32
    return %arg0, %c0_i32 : i32, i32
  }
}

</mosaic_0001>

<llo_original>
// kernel: qnetwork_forward.1
$region0: #{qnetwork_forward.1}
  #allocation0 [shape = 'u32[]', space=smem, size = 0x4, offset = 0x4, fixed_abs, tag = 'smem constant byte address 0x4 - core index']
  #allocation1 [shape = 'u32[72,128]{1,0:T(1,128)}', space=vmem, size = 0x9000, scoped, tag = 'internal scratch']
  %s0 = inlined_call_operand.hbm [shape: f32[8,8], index: 0, kind: input, shape index: {}]
  %s1 = inlined_call_operand.hbm [shape: bf16[8,128], index: 1, kind: input, shape index: {}]
  %s2 = inlined_call_operand.vmem [shape: f32[1,128], index: 2, kind: input, shape index: {}]
  %s3 = inlined_call_operand.hbm [shape: bf16[128,128], index: 3, kind: input, shape index: {}]
  %s4 = inlined_call_operand.vmem [shape: f32[1,128], index: 4, kind: input, shape index: {}]
  %s5 = inlined_call_operand.hbm [shape: bf16[128,128], index: 5, kind: input, shape index: {}]
  %s6 = inlined_call_operand.vmem [shape: f32[1,128], index: 6, kind: input, shape index: {}]
  %s7 = inlined_call_operand.vmem [shape: bf16[8,128], index: 7, kind: output, shape index: {}]
  %s8 = sld [smem:[#allocation0]]
  $region54: #{qnetwork_forward.1} parent=0
    _
  %s10 = ssub.s32 1, %s8
  %s11 = scalar_select 0, %s10, %s8
  $region1: #{qnetwork_forward.1} parent=0
    #allocation2 [shape = 'u8[4096]{0}', space=vmem, size = 0x1000, scoped, tag = 'input window, operand 0, single buffered']
    #allocation3 [shape = 's32[1]{0}', space=sflag, size = 0x4, scoped, tag = 'scoped memory for qnetwork_forward.1']
    #allocation4 [shape = 'u8[2048]{0}', space=vmem, size = 0x800, scoped, tag = 'input window, operand 1, single buffered']
    #allocation5 [shape = 's32[1]{0}', space=sflag, size = 0x4, scoped, tag = 'scoped memory for qnetwork_forward.1']
    #allocation6 [shape = 'u8[32768]{0}', space=vmem, size = 0x8000, scoped, tag = 'input window, operand 3, single buffered']
    #allocation7 [shape = 'u8[32768]{0}', space=vmem, size = 0x8000, scoped, tag = 'input window, operand 5, single buffered']
    #allocation8 [shape = 's32[1]{0}', space=sflag, size = 0x4, scoped, tag = 'scoped memory for qnetwork_forward.1']
    %12 = vsyncpa [#allocation3], 0
    %13 = vsyncpa [#allocation5], 0
    %14 = vsyncpa [#allocation8], 0
    // Predicated region
    $region2: #{qnetwork_forward.1} parent=1 // pred_check
      _
    $region3: #{qnetwork_forward.1} parent=1 // pred_check_branch
      %16 = sbr.rel (0) target = $region5
    $region4: #{qnetwork_forward.1} parent=1 // pred_region
      %18 = vsyncadd [#allocation3], 0
      %s20 = sshll.u32 %s0, 4
      %s21 = int_to_ptr.hbm [resolvable:$true] %s20
      %s22 = sshll.u32 [#allocation2], 4
      %s23 = int_to_ptr.vmem [resolvable:$true] %s22
      %25 = dma.hbm_to_vmem [thread:$0]  %s21, 128, %s23, [#allocation3]
    $region5: #{qnetwork_forward.1} parent=1 // pred_fallthru
      _
    // Predicated region
    $region6: #{qnetwork_forward.1} parent=1 // pred_check
      _
    $region7: #{qnetwork_forward.1} parent=1 // pred_check_branch
      %27 = sbr.rel (0) target = $region9
    $region8: #{qnetwork_forward.1} parent=1 // pred_region
      %29 = vsyncadd [#allocation5], 0
      %s31 = sshll.u32 %s1, 4
      %s32 = int_to_ptr.hbm [resolvable:$true] %s31
      %s33 = sshll.u32 [#allocation4], 4
      %s34 = int_to_ptr.vmem [resolvable:$true] %s33
      %36 = dma.hbm_to_vmem [thread:$0]  %s32, 64, %s34, [#allocation5]
    $region9: #{qnetwork_forward.1} parent=1 // pred_fallthru
      _
    // Predicated region
    $region10: #{qnetwork_forward.1} parent=1 // pred_check
      _
    $region11: #{qnetwork_forward.1} parent=1 // pred_check_branch
      %38 = sbr.rel (0) target = $region13
    $region12: #{qnetwork_forward.1} parent=1 // pred_region
      _
    $region13: #{qnetwork_forward.1} parent=1 // pred_fallthru
      _
    // Predicated region
    $region14: #{qnetwork_forward.1} parent=1 // pred_check
      _
    $region15: #{qnetwork_forward.1} parent=1 // pred_check_branch
      %40 = sbr.rel (0) target = $region17
    $region16: #{qnetwork_forward.1} parent=1 // pred_region
      %42 = vsyncadd [#allocation5], 0
      %s43 = sshll.u32 %s3, 4
      %s44 = int_to_ptr.hbm [resolvable:$true] %s43
      %s45 = sshll.u32 [#allocation6], 4
      %s46 = int_to_ptr.vmem [resolvable:$true] %s45
      %51 = dma.hbm_to_vmem [thread:$0]  %s44, 1024, %s46, [#allocation5], 64, 64, 4
    $region17: #{qnetwork_forward.1} parent=1 // pred_fallthru
      _
    // Predicated region
    $region18: #{qnetwork_forward.1} parent=1 // pred_check
      _
    $region19: #{qnetwork_forward.1} parent=1 // pred_check_branch
      %53 = sbr.rel (0) target = $region21
    $region20: #{qnetwork_forward.1} parent=1 // pred_region
      _
    $region21: #{qnetwork_forward.1} parent=1 // pred_fallthru
      _
    // Predicated region
    $region22: #{qnetwork_forward.1} parent=1 // pred_check
      _
    $region23: #{qnetwork_forward.1} parent=1 // pred_check_branch
      %55 = sbr.rel (0) target = $region25
    $region24: #{qnetwork_forward.1} parent=1 // pred_region
      %57 = vsyncadd [#allocation8], 0
      %s58 = sshll.u32 %s5, 4
      %s59 = int_to_ptr.hbm [resolvable:$true] %s58
      %s60 = sshll.u32 [#allocation7], 4
      %s61 = int_to_ptr.vmem [resolvable:$true] %s60
      %66 = dma.hbm_to_vmem [thread:$0]  %s59, 1024, %s61, [#allocation8], 64, 64, 4
    $region25: #{qnetwork_forward.1} parent=1 // pred_fallthru
      _
    // Predicated region
    $region26: #{qnetwork_forward.1} parent=1 // pred_check
      _
    $region27: #{qnetwork_forward.1} parent=1 // pred_check_branch
      %68 = sbr.rel (0) target = $region29
    $region28: #{qnetwork_forward.1} parent=1 // pred_region
      _
    $region29: #{qnetwork_forward.1} parent=1 // pred_fallthru
      _
    // Predicated region
    $region30: #{qnetwork_forward.1} parent=1 // pred_check
      _
    $region31: #{qnetwork_forward.1} parent=1 // pred_check_branch
      %70 = sbr.rel (0) target = $region33
    $region32: #{qnetwork_forward.1} parent=1 // pred_region
      %72 = dma.done [#allocation3], 128
    $region33: #{qnetwork_forward.1} parent=1 // pred_fallthru
      _
    // Predicated region
    $region34: #{qnetwork_forward.1} parent=1 // pred_check
      _
    $region35: #{qnetwork_forward.1} parent=1 // pred_check_branch
      %74 = sbr.rel (0) target = $region37
    $region36: #{qnetwork_forward.1} parent=1 // pred_region
      %76 = dma.done [#allocation5], 64
    $region37: #{qnetwork_forward.1} parent=1 // pred_fallthru
      _
    // Predicated region
    $region38: #{qnetwork_forward.1} parent=1 // pred_check
      _
    $region39: #{qnetwork_forward.1} parent=1 // pred_check_branch
      %78 = sbr.rel (0) target = $region41
    $region40: #{qnetwork_forward.1} parent=1 // pred_region
      %80 = dma.done [#allocation5], 1024
    $region41: #{qnetwork_forward.1} parent=1 // pred_fallthru
      _
    // Predicated region
    $region42: #{qnetwork_forward.1} parent=1 // pred_check
      _
    $region43: #{qnetwork_forward.1} parent=1 // pred_check_branch
      %82 = sbr.rel (0) target = $region45
    $region44: #{qnetwork_forward.1} parent=1 // pred_region
      %84 = dma.done [#allocation8], 1024
    $region45: #{qnetwork_forward.1} parent=1 // pred_fallthru
      _
    %v86 = vld [vmem:[#allocation2] sm:$0xff]
    %v87 = vpack.c.bf16 %v86, %v86
    %v88 = vld [vmem:[#allocation4] sm:$0xf]
    %v89 = vld [vmem:[%s2] sm:$0x1]
    %v91 = vperm.slane %v89, 0
    %vm93 = vcmask 64512
    %v95 = vsel %vm93, %v87, 0
    %vm97 = vcmask 1043456
    %v99 = vsel %vm97, %v88, 0
    %101 = vmatpush.bf16.msra.mxu0 0
    %102 = vmatpush.bf16.msra.mxu0 0
    %103 = vmatpush.bf16.msra.mxu0 0
    %104 = vmatpush.bf16.msra.mxu0 0
    %105 = vmatpush.bf16.msra.mxu0 0
    %106 = vmatpush.bf16.msra.mxu0 0
    %107 = vmatpush.bf16.msra.mxu0 0
    %108 = vmatpush.bf16.msra.mxu0 %v99
    %109 = vmatmul.bf16.gmra.mxu0 %v95
    %v110 = vpop.f32.mrf.mxu0
    %v111 = vadd.f32 %v91, %v110
    %v112 = vpop.f32.mrf.mxu0
    %113 = vdwg.mxu0
    %v114 = vmax.f32 %v111, 0.0
    %v115 = vpack.c.bf16 %v114, %v114
    %v116 = vld [vmem:[#allocation6] sm:$0xf]
    %v117 = vld [vmem:[#allocation6 + $0x4] sm:$0xf]
    %v118 = vld [vmem:[#allocation6 + $0x8] sm:$0xf]
    %v119 = vld [vmem:[#allocation6 + $0xc] sm:$0xf]
    %v120 = vld [vmem:[#allocation6 + $0x10] sm:$0xf]
    %v121 = vld [vmem:[#allocation6 + $0x14] sm:$0xf]
    %v122 = vld [vmem:[#allocation6 + $0x18] sm:$0xf]
    %v123 = vld [vmem:[#allocation6 + $0x1c] sm:$0xf]
    %v124 = vld [vmem:[#allocation6 + $0x20] sm:$0xf]
    %v125 = vld [vmem:[#allocation6 + $0x24] sm:$0xf]
    %v126 = vld [vmem:[#allocation6 + $0x28] sm:$0xf]
    %v127 = vld [vmem:[#allocation6 + $0x2c] sm:$0xf]
    %v128 = vld [vmem:[#allocation6 + $0x30] sm:$0xf]
    %v129 = vld [vmem:[#allocation6 + $0x34] sm:$0xf]
    %v130 = vld [vmem:[#allocation6 + $0x38] sm:$0xf]
    %v131 = vld [vmem:[#allocation6 + $0x3c] sm:$0xf]
    %v132 = vld [vmem:[%s4] sm:$0x1]
    %v134 = vperm.slane %v132, 0
    %v152 = vunpack.c.l.b16 %v116
    %v153 = vunpack.c.l.b16 %v117
    %v154 = vunpack.c.l.b16 %v118
    %v155 = vunpack.c.l.b16 %v119
    %v156 = vunpack.c.l.b16 %v120
    %v157 = vunpack.c.l.b16 %v121
    %v158 = vunpack.c.l.b16 %v122
    %v159 = vunpack.c.l.b16 %v123
    %v160 = vunpack.c.l.b16 %v124
    %v161 = vunpack.c.l.b16 %v125
    %v162 = vunpack.c.l.b16 %v126
    %v163 = vunpack.c.l.b16 %v127
    %v164 = vunpack.c.l.b16 %v128
    %v165 = vunpack.c.l.b16 %v129
    %v166 = vunpack.c.l.b16 %v130
    %v167 = vunpack.c.l.b16 %v131
    %v168 = vpack.c.b16 %v153, %v152
    %v169 = vpack.c.b16 %v155, %v154
    %v170 = vpack.c.b16 %v157, %v156
    %v171 = vpack.c.b16 %v159, %v158
    %v172 = vpack.c.b16 %v161, %v160
    %v173 = vpack.c.b16 %v163, %v162
    %v174 = vpack.c.b16 %v165, %v164
    %v175 = vpack.c.b16 %v167, %v166
    %184 = vmatpush.bf16.msra.mxu0 %v175
    %185 = vmatpush.bf16.msra.mxu0 %v174
    %186 = vmatpush.bf16.msra.mxu0 %v173
    %187 = vmatpush.bf16.msra.mxu0 %v172
    %188 = vmatpush.bf16.msra.mxu0 %v171
    %189 = vmatpush.bf16.msra.mxu0 %v170
    %190 = vmatpush.bf16.msra.mxu0 %v169
    %191 = vmatpush.bf16.msra.mxu0 %v168
    %192 = vmatmul.bf16.gmra.mxu0 %v115
    %v193 = vpop.f32.mrf.mxu0
    %v194 = vadd.f32 %v134, %v193
    %v195 = vpop.f32.mrf.mxu0
    %196 = vdwg.mxu0
    %v197 = vmax.f32 %v194, 0.0
    %v198 = vpack.c.bf16 %v197, %v197
    %v199 = vld [vmem:[#allocation7] sm:$0xf]
    %v200 = vld [vmem:[#allocation7 + $0x4] sm:$0xf]
    %v201 = vld [vmem:[#allocation7 + $0x8] sm:$0xf]
    %v202 = vld [vmem:[#allocation7 + $0xc] sm:$0xf]
    %v203 = vld [vmem:[#allocation7 + $0x10] sm:$0xf]
    %v204 = vld [vmem:[#allocation7 + $0x14] sm:$0xf]
    %v205 = vld [vmem:[#allocation7 + $0x18] sm:$0xf]
    %v206 = vld [vmem:[#allocation7 + $0x1c] sm:$0xf]
    %v207 = vld [vmem:[#allocation7 + $0x20] sm:$0xf]
    %v208 = vld [vmem:[#allocation7 + $0x24] sm:$0xf]
    %v209 = vld [vmem:[#allocation7 + $0x28] sm:$0xf]
    %v210 = vld [vmem:[#allocation7 + $0x2c] sm:$0xf]
    %v211 = vld [vmem:[#allocation7 + $0x30] sm:$0xf]
    %v212 = vld [vmem:[#allocation7 + $0x34] sm:$0xf]
    %v213 = vld [vmem:[#allocation7 + $0x38] sm:$0xf]
    %v214 = vld [vmem:[#allocation7 + $0x3c] sm:$0xf]
    %v215 = vld [vmem:[%s6] sm:$0x1]
    %v217 = vperm.slane %v215, 0
    %v235 = vunpack.c.l.b16 %v199
    %v236 = vunpack.c.l.b16 %v200
    %v237 = vunpack.c.l.b16 %v201
    %v238 = vunpack.c.l.b16 %v202
    %v239 = vunpack.c.l.b16 %v203
    %v240 = vunpack.c.l.b16 %v204
    %v241 = vunpack.c.l.b16 %v205
    %v242 = vunpack.c.l.b16 %v206
    %v243 = vunpack.c.l.b16 %v207
    %v244 = vunpack.c.l.b16 %v208
    %v245 = vunpack.c.l.b16 %v209
    %v246 = vunpack.c.l.b16 %v210
    %v247 = vunpack.c.l.b16 %v211
    %v248 = vunpack.c.l.b16 %v212
    %v249 = vunpack.c.l.b16 %v213
    %v250 = vunpack.c.l.b16 %v214
    %v251 = vpack.c.b16 %v236, %v235
    %v252 = vpack.c.b16 %v238, %v237
    %v253 = vpack.c.b16 %v240, %v239
    %v254 = vpack.c.b16 %v242, %v241
    %v255 = vpack.c.b16 %v244, %v243
    %v256 = vpack.c.b16 %v246, %v245
    %v257 = vpack.c.b16 %v248, %v247
    %v258 = vpack.c.b16 %v250, %v249
    %267 = vmatpush.bf16.msra.mxu0 %v258
    %268 = vmatpush.bf16.msra.mxu0 %v257
    %269 = vmatpush.bf16.msra.mxu0 %v256
    %270 = vmatpush.bf16.msra.mxu0 %v255
    %271 = vmatpush.bf16.msra.mxu0 %v254
    %272 = vmatpush.bf16.msra.mxu0 %v253
    %273 = vmatpush.bf16.msra.mxu0 %v252
    %274 = vmatpush.bf16.msra.mxu0 %v251
    %275 = vmatmul.bf16.gmra.mxu0 %v198
    %v276 = vpop.f32.mrf.mxu0
    %v277 = vadd.f32 %v217, %v276
    %v278 = vpop.f32.mrf.mxu0
    %279 = vdwg.mxu0
    %v280 = vpack.c.bf16 %v277, %v277
    %281 = vst [vmem:[%s7] sm:$0xf] %v280
    // Predicated region
    $region46: #{qnetwork_forward.1} parent=1 // pred_check
      _
    $region47: #{qnetwork_forward.1} parent=1 // pred_check_branch
      %283 = sbr.rel (0) target = $region49
    $region48: #{qnetwork_forward.1} parent=1 // pred_region
      _
    $region49: #{qnetwork_forward.1} parent=1 // pred_fallthru
      _
    // Predicated region
    $region50: #{qnetwork_forward.1} parent=1 // pred_check
      _
    $region51: #{qnetwork_forward.1} parent=1 // pred_check_branch
      %285 = sbr.rel (0) target = $region53
    $region52: #{qnetwork_forward.1} parent=1 // pred_region
      _
    $region53: #{qnetwork_forward.1} parent=1 // pred_fallthru
      _
    %286 = vsyncpa [#allocation3], 1
    %287 = vsyncpa [#allocation5], 1
    %288 = vsyncpa [#allocation8], 1

</llo_original>
